<compile_context>
chip_gen: v7x
topology: tpu7x:2x2x1
jax: 0.10.0
libtpu: 0.0.40
codegen_flags: <defaults>
</compile_context>

<pallas_src>
import functools

import jax
import jax.numpy as jnp
from jax.experimental import pallas as pl
from jax.experimental.pallas import tpu as pltpu


def _round_up(x, m):
    return (x + m - 1) // m * m


def _loss_kernel(x_ref, y_ref, frow_ref, fcol_ref, trow_ref, tcol_ref,
                 out_ref,
                 acc_ref, m_ref, sexp_ref, sls_ref, cnt_ref, *,
                 batch, t_sz, n_sz,
                 lam_consistency, lam_contrastive, inv_temp):
    i = pl.program_id(0)          # row tile
    j = pl.program_id(1)          # column tile (reduction axis, innermost)
    n_rt = pl.num_programs(0)
    n_ct = pl.num_programs(1)
    tr = frow_ref.shape[0]
    tc = fcol_ref.shape[0]

    # ---- init global scalar accumulators on the very first grid step ------
    @pl.when((i == 0) & (j == 0))
    def _init_totals():
        acc_ref[0] = jnp.float32(0.0)   # sum (noise_pred - noise)^2
        acc_ref[1] = jnp.float32(0.0)   # sum (theta_pred - theta_init)^2
        acc_ref[2] = jnp.float32(0.0)   # sum cos_sim
        acc_ref[3] = jnp.float32(0.0)   # sum mean_log_prob

    # Row-validity mask (handles padding of B up to the tile size).
    row_ids = i * tr + jax.lax.broadcasted_iota(jnp.int32, (tr, 1), 0)
    rmask = (row_ids < batch).astype(jnp.float32)                       # (tr, 1)

    # ---- per-row-tile small losses + reset of streaming accumulators ------
    @pl.when(j == 0)
    def _row_tile_init():
        x = x_ref[...].astype(jnp.float32)     # [theta_pred | noise_pred]
        y = y_ref[...].astype(jnp.float32)     # [theta_init | noise     ]
        col = jax.lax.broadcasted_iota(jnp.int32, (1, t_sz + n_sz), 1)
        mask_t = (col < t_sz).astype(jnp.float32)   # theta columns
        mask_n = 1.0 - mask_t                       # noise columns

        d = x - y
        d2 = d * d * rmask
        acc_ref[0] = acc_ref[0] + jnp.sum(d2 * mask_n)
        acc_ref[1] = acc_ref[1] + jnp.sum(d2 * mask_t)

        dot = jnp.sum(x * y * mask_t, axis=1, keepdims=True)
        pp = jnp.sum(x * x * mask_t, axis=1, keepdims=True)
        ii = jnp.sum(y * y * mask_t, axis=1, keepdims=True)
        cos = (dot
               * jax.lax.rsqrt(jnp.maximum(pp, 1e-16))
               * jax.lax.rsqrt(jnp.maximum(ii, 1e-16)))
        acc_ref[2] = acc_ref[2] + jnp.sum(cos * rmask)

        m_ref[...] = jnp.full_like(m_ref, -1e30)
        sexp_ref[...] = jnp.zeros_like(sexp_ref)
        sls_ref[...] = jnp.zeros_like(sls_ref)
        cnt_ref[...] = jnp.zeros_like(cnt_ref)

    # ---- streaming supervised-contrastive pass over column tiles ----------
    f_row = frow_ref[...].astype(jnp.float32)                           # (tr, D)
    f_col = fcol_ref[...].astype(jnp.float32)                           # (tc, D)
    fr = f_row * jax.lax.rsqrt(
        jnp.maximum(jnp.sum(f_row * f_row, axis=1, keepdims=True), 1e-24))
    fc = f_col * jax.lax.rsqrt(
        jnp.maximum(jnp.sum(f_col * f_col, axis=1, keepdims=True), 1e-24))

    sim = jax.lax.dot_general(
        fr, fc, (((1,), (1,)), ((), ())),
        preferred_element_type=jnp.float32) * inv_temp                  # (tr, tc)

    col_ids = j * tc + jax.lax.broadcasted_iota(jnp.int32, (1, tc), 1)
    cmask = (col_ids < batch).astype(jnp.float32)                       # (1, tc)
    labels = (trow_ref[...] == tcol_ref[...]).astype(jnp.float32) * cmask

    m_old = m_ref[...]
    m_new = jnp.maximum(m_old, jnp.max(sim, axis=1, keepdims=True))
    e = jnp.exp(sim - m_new) * cmask
    sexp_ref[...] = (sexp_ref[...] * jnp.exp(m_old - m_new)
                     + jnp.sum(e, axis=1, keepdims=True))
    sls_ref[...] = sls_ref[...] + jnp.sum(sim * labels, axis=1, keepdims=True)
    cnt_ref[...] = cnt_ref[...] + jnp.sum(labels, axis=1, keepdims=True)
    m_ref[...] = m_new

    # ---- finish this row tile at its last column tile ----------------------
    @pl.when(j == n_ct - 1)
    def _row_tile_finalize():
        cnt = cnt_ref[...]
        log_denom = m_ref[...] + jnp.log(sexp_ref[...])
        mean_log_prob = (sls_ref[...] - cnt * log_denom) / (cnt + 1e-6)
        acc_ref[3] = acc_ref[3] + jnp.sum(mean_log_prob * rmask)

    # ---- final scalar outputs on the very last grid step -------------------
    @pl.when((i == n_rt - 1) & (j == n_ct - 1))
    def _finalize():
        noise_loss = acc_ref[0] * (1.0 / (batch * n_sz))
        l2_loss = acc_ref[1] * (1.0 / (batch * t_sz))
        cos_loss = 1.0 - acc_ref[2] * (1.0 / batch)
        consistency_loss = l2_loss + 0.1 * cos_loss
        contrastive_loss = -acc_ref[3] * (1.0 / batch)
        total = (noise_loss
                 + lam_consistency * consistency_loss
                 + lam_contrastive * contrastive_loss)
        out_ref[0] = total
        out_ref[1] = noise_loss
        out_ref[2] = consistency_loss
        out_ref[3] = contrastive_loss


def diffusion_theta_loss2(theta_pred, theta_init, noise_pred, noise, features, targets,
                          lam_consistency=0.5, lam_contrastive=0.3, temperature=0.07,
                          max_tile=256):
    B = theta_pred.shape[0]
    D = features.shape[-1]
    t_sz = 1
    for s in theta_pred.shape[1:]:
        t_sz *= int(s)
    n_sz = 1
    for s in noise_pred.shape[1:]:
        n_sz *= int(s)

    tile = max_tile if B > max_tile else _round_up(B, 8)
    B_pad = _round_up(B, tile)
    n_rt = B_pad // tile
    n_ct = B_pad // tile

    # Pack the four small per-sample tensors into two lane-contiguous inputs;
    # dtype casts happen inside the kernel.
    x = jnp.concatenate(
        [theta_pred.reshape(B, t_sz), noise_pred.reshape(B, n_sz)], axis=1)
    y = jnp.concatenate(
        [theta_init.reshape(B, t_sz), noise.reshape(B, n_sz)], axis=1)
    feat = features.reshape(B, D)
    tgt = targets.reshape(B).astype(jnp.int32)
    tgt_row = tgt.reshape(B, 1)
    tgt_col = tgt.reshape(1, B)

    if B_pad != B:
        pad = B_pad - B
        x = jnp.pad(x, ((0, pad), (0, 0)))
        y = jnp.pad(y, ((0, pad), (0, 0)))
        feat = jnp.pad(feat, ((0, pad), (0, 0)))
        tgt_row = jnp.pad(tgt_row, ((0, pad), (0, 0)), constant_values=-1)
        tgt_col = jnp.pad(tgt_col, ((0, 0), (0, pad)), constant_values=-1)

    P = t_sz + n_sz

    kernel = functools.partial(
        _loss_kernel,
        batch=int(B), t_sz=int(t_sz), n_sz=int(n_sz),
        lam_consistency=float(lam_consistency),
        lam_contrastive=float(lam_contrastive),
        inv_temp=float(1.0 / temperature),
    )

    grid_spec = pltpu.PrefetchScalarGridSpec(
        num_scalar_prefetch=0,
        grid=(n_rt, n_ct),
        in_specs=[
            pl.BlockSpec((tile, P), lambda i, j: (i, 0)),      # packed pred
            pl.BlockSpec((tile, P), lambda i, j: (i, 0)),      # packed target
            pl.BlockSpec((tile, D), lambda i, j: (i, 0)),      # feature rows
            pl.BlockSpec((tile, D), lambda i, j: (j, 0)),      # feature cols
            pl.BlockSpec((tile, 1), lambda i, j: (i, 0)),      # targets rows (int32)
            pl.BlockSpec((1, tile), lambda i, j: (0, j)),      # targets cols (int32)
        ],
        out_specs=pl.BlockSpec(memory_space=pltpu.MemorySpace.SMEM),
        scratch_shapes=[
            pltpu.SMEM((4,), jnp.float32),                     # global scalar accs
            pltpu.VMEM((tile, 1), jnp.float32),                # running row max
            pltpu.VMEM((tile, 1), jnp.float32),                # running sum exp
            pltpu.VMEM((tile, 1), jnp.float32),                # sum(label*sim)
            pltpu.VMEM((tile, 1), jnp.float32),                # sum(label)
        ],
    )

    out = pl.pallas_call(
        kernel,
        out_shape=jax.ShapeDtypeStruct((4,), jnp.float32),
        grid_spec=grid_spec,
        compiler_params=pltpu.CompilerParams(
            # Both axes reduce into shared scalar accumulators -> "arbitrary".
            dimension_semantics=("arbitrary", "arbitrary"),
            vmem_limit_bytes=32 * 1024 * 1024,
        ),
    )(x, y, feat, feat, tgt_row, tgt_col)

    total = out[0]
    # TODO(synk): PyTorch returns stats via .item() (host floats); here they stay JAX scalars.
    stats = {
        "noise_loss": out[1],
        "consistency_loss": out[2],
        "contrastive_loss": out[3],
    }
    return total, stats


def _reference(theta_pred, theta_init, noise_pred, noise, features, targets,
               lam_consistency=0.5, lam_contrastive=0.3, temperature=0.07):
    """Pure-JAX reference mirroring the PyTorch forward exactly."""
    B = theta_pred.shape[0]
    npred = noise_pred.reshape(B, 3, 2, 3)
    nz = noise.reshape(B, 3, 2, 3)
    noise_loss = jnp.mean((npred - nz) ** 2)

    tp = theta_pred.reshape(B, -1)
    ti = theta_init.reshape(B, -1)
    l2_loss = jnp.mean((tp - ti) ** 2)
    dot = jnp.sum(tp * ti, axis=1)
    cos = dot / (jnp.maximum(jnp.linalg.norm(tp, axis=1), 1e-8)
                 * jnp.maximum(jnp.linalg.norm(ti, axis=1), 1e-8))
    cos_loss = 1.0 - jnp.mean(cos)
    consistency_loss = l2_loss + 0.1 * cos_loss

    fn = features / jnp.maximum(jnp.linalg.norm(features, axis=1, keepdims=True), 1e-12)
    sim = fn @ fn.T / temperature
    labels = (targets[:, None] == targets[None, :]).astype(jnp.float32)
    log_prob = sim - jnp.log(jnp.sum(jnp.exp(sim), axis=1, keepdims=True))
    mean_log_prob = jnp.sum(log_prob * labels, axis=1) / (jnp.sum(labels, axis=1) + 1e-6)
    contrastive_loss = -jnp.mean(mean_log_prob)

    total = (noise_loss + lam_consistency * consistency_loss
             + lam_contrastive * contrastive_loss)
    stats = {"noise_loss": noise_loss, "consistency_loss": consistency_loss,
             "contrastive_loss": contrastive_loss}
    return total, stats


if __name__ == "__main__":
    key = jax.random.PRNGKey(0)
    k1, k2, k3, k4, k5 = jax.random.split(key, 5)

    B, D = 8, 32
    base = jnp.broadcast_to(
        jnp.array([[1., 0., 0.], [0., 1., 0.]], jnp.float32), (B, 2, 3))
    theta_pred = base + 0.1 * jax.random.normal(k1, (B, 2, 3), dtype=jnp.float32)
    theta_init = base
    noise_pred = jax.random.normal(k2, (B, 18), dtype=jnp.float32)
    noise = jax.random.normal(k3, (B, 18), dtype=jnp.float32)
    features = jax.random.normal(k4, (B, D), dtype=jnp.float32)
    targets = jax.random.randint(k5, (B,), 0, 3, dtype=jnp.int32)

    total, stats = diffusion_theta_loss2(
        theta_pred, theta_init, noise_pred, noise, features, targets)
    total = jax.block_until_ready(total)

    ref_total, ref_stats = _reference(
        theta_pred, theta_init, noise_pred, noise, features, targets)
    assert jnp.allclose(total, ref_total, rtol=1e-5, atol=1e-5), (total, ref_total)
    for k in ("noise_loss", "consistency_loss", "contrastive_loss"):
        assert jnp.allclose(stats[k], ref_stats[k], rtol=1e-4, atol=1e-5), (
            k, stats[k], ref_stats[k])

    print("KERNEL_OK")
</pallas_src>

<mosaic_0001>
module attributes {stable_mosaic.version = 11 : i64} {
  func.func @_loss_kernel(%arg0: i32, %arg1: i32, %arg2: memref<8x24xf32, #tpu.memory_space<vmem>>, %arg3: memref<8x24xf32, #tpu.memory_space<vmem>>, %arg4: memref<8x32xf32, #tpu.memory_space<vmem>>, %arg5: memref<8x32xf32, #tpu.memory_space<vmem>>, %arg6: memref<8x1xi32, #tpu.memory_space<vmem>>, %arg7: memref<1x8xi32, #tpu.memory_space<vmem>>, %arg8: memref<4xf32, #tpu.memory_space<smem>>, %arg9: memref<4xf32, #tpu.memory_space<smem>>, %arg10: memref<8x1xf32, #tpu.memory_space<vmem>>, %arg11: memref<8x1xf32, #tpu.memory_space<vmem>>, %arg12: memref<8x1xf32, #tpu.memory_space<vmem>>, %arg13: memref<8x1xf32, #tpu.memory_space<vmem>>) attributes {dimension_semantics = [#tpu.dimension_semantics<arbitrary>, #tpu.dimension_semantics<arbitrary>], iteration_bounds = array<i64: 1, 1>, scalar_prefetch = 0 : i64, scratch_operands = 5 : i64, tpu.core_type = #tpu.core_type<tc>, window_params = [{transform_indices = @transform_0, window_bounds = array<i64: 8, 24>}, {transform_indices = @transform_1, window_bounds = array<i64: 8, 24>}, {transform_indices = @transform_2, window_bounds = array<i64: 8, 32>}, {transform_indices = @transform_3, window_bounds = array<i64: 8, 32>}, {transform_indices = @transform_4, window_bounds = array<i64: 8, 1>}, {transform_indices = @transform_5, window_bounds = array<i64: 1, 8>}, {transform_indices = @transform_6, window_bounds = array<i64: 4>}]} {
    %c0_i32 = arith.constant 0 : i32
    %0 = arith.cmpi eq, %arg0, %c0_i32 : i32
    %c0_i32_0 = arith.constant 0 : i32
    %1 = arith.cmpi eq, %arg1, %c0_i32_0 : i32
    %2 = arith.andi %0, %1 : i1
    %3 = arith.extui %2 : i1 to i32
    %c0_i32_1 = arith.constant 0 : i32
    %4 = arith.cmpi ne, %3, %c0_i32_1 : i32
    scf.if %4 {
      %cst_44 = arith.constant 0.000000e+00 : f32
      %c0_45 = arith.constant 0 : index
      %91 = memref.load %arg9[%c0_45] : memref<4xf32, #tpu.memory_space<smem>>
      memref.store %cst_44, %arg9[%c0_45] : memref<4xf32, #tpu.memory_space<smem>>
      %cst_46 = arith.constant 0.000000e+00 : f32
      %c1 = arith.constant 1 : index
      %92 = memref.load %arg9[%c1] : memref<4xf32, #tpu.memory_space<smem>>
      memref.store %cst_46, %arg9[%c1] : memref<4xf32, #tpu.memory_space<smem>>
      %cst_47 = arith.constant 0.000000e+00 : f32
      %c2 = arith.constant 2 : index
      %93 = memref.load %arg9[%c2] : memref<4xf32, #tpu.memory_space<smem>>
      memref.store %cst_47, %arg9[%c2] : memref<4xf32, #tpu.memory_space<smem>>
      %cst_48 = arith.constant 0.000000e+00 : f32
      %c3 = arith.constant 3 : index
      %94 = memref.load %arg9[%c3] : memref<4xf32, #tpu.memory_space<smem>>
      memref.store %cst_48, %arg9[%c3] : memref<4xf32, #tpu.memory_space<smem>>
    } else {
    }
    %c8_i32 = arith.constant 8 : i32
    %5 = arith.muli %arg0, %c8_i32 : i32
    %6 = tpu.iota {dimensions = array<i32: 0>} : vector<8x1xi32>
    %7 = vector.broadcast %5 : i32 to vector<8x1xi32>
    %8 = arith.addi %7, %6 : vector<8x1xi32>
    %c8_i32_2 = arith.constant 8 : i32
    %9 = vector.broadcast %c8_i32_2 : i32 to vector<8x1xi32>
    %10 = arith.cmpi slt, %8, %9 : vector<8x1xi32>
    %11 = arith.extui %10 : vector<8x1xi1> to vector<8x1xi32>
    %12 = arith.sitofp %11 : vector<8x1xi32> to vector<8x1xf32>
    %c0_i32_3 = arith.constant 0 : i32
    %13 = arith.cmpi eq, %arg1, %c0_i32_3 : i32
    %14 = arith.extui %13 : i1 to i32
    %c0_i32_4 = arith.constant 0 : i32
    %15 = arith.cmpi ne, %14, %c0_i32_4 : i32
    scf.if %15 {
      %c0_44 = arith.constant 0 : index
      %c0_45 = arith.constant 0 : index
      %91 = vector.load %arg2[%c0_44, %c0_45] : memref<8x24xf32, #tpu.memory_space<vmem>>, vector<8x24xf32>
      %c0_46 = arith.constant 0 : index
      %c0_47 = arith.constant 0 : index
      %92 = vector.load %arg3[%c0_46, %c0_47] : memref<8x24xf32, #tpu.memory_space<vmem>>, vector<8x24xf32>
      %93 = tpu.iota {dimensions = array<i32: 1>} : vector<1x24xi32>
      %c6_i32 = arith.constant 6 : i32
      %94 = vector.broadcast %c6_i32 : i32 to vector<1x24xi32>
      %95 = arith.cmpi slt, %93, %94 : vector<1x24xi32>
      %96 = arith.extui %95 : vector<1x24xi1> to vector<1x24xi32>
      %97 = arith.sitofp %96 : vector<1x24xi32> to vector<1x24xf32>
      %cst_48 = arith.constant 1.000000e+00 : f32
      %98 = vector.broadcast %cst_48 : f32 to vector<1x24xf32>
      %99 = arith.subf %98, %97 : vector<1x24xf32>
      %100 = arith.subf %91, %92 : vector<8x24xf32>
      %101 = arith.mulf %100, %100 : vector<8x24xf32>
      %102 = vector.broadcast %12 : vector<8x1xf32> to vector<8x24xf32>
      %103 = arith.mulf %101, %102 : vector<8x24xf32>
      %c0_49 = arith.constant 0 : index
      %104 = memref.load %arg9[%c0_49] : memref<4xf32, #tpu.memory_space<smem>>
      %105 = vector.broadcast %99 : vector<1x24xf32> to vector<8x24xf32>
      %106 = arith.mulf %103, %105 : vector<8x24xf32>
      %107 = vector.shape_cast %106 : vector<8x24xf32> to vector<1x8x24xf32>
      %cst_50 = arith.constant dense<0.000000e+00> : vector<1xf32>
      %108 = vector.multi_reduction <add>, %107, %cst_50 [1, 2] : vector<1x8x24xf32> to vector<1xf32>
      %109 = vector.shape_cast %108 : vector<1xf32> to vector<1x1x1xf32>
      %110 = vector.extract %109[0, 0, 0] : f32 from vector<1x1x1xf32>
      %111 = arith.addf %104, %110 : f32
      %c0_51 = arith.constant 0 : index
      %112 = memref.load %arg9[%c0_51] : memref<4xf32, #tpu.memory_space<smem>>
      memref.store %111, %arg9[%c0_51] : memref<4xf32, #tpu.memory_space<smem>>
      %c1 = arith.constant 1 : index
      %113 = memref.load %arg9[%c1] : memref<4xf32, #tpu.memory_space<smem>>
      %114 = vector.broadcast %97 : vector<1x24xf32> to vector<8x24xf32>
      %115 = arith.mulf %103, %114 : vector<8x24xf32>
      %116 = vector.shape_cast %115 : vector<8x24xf32> to vector<1x8x24xf32>
      %cst_52 = arith.constant dense<0.000000e+00> : vector<1xf32>
      %117 = vector.multi_reduction <add>, %116, %cst_52 [1, 2] : vector<1x8x24xf32> to vector<1xf32>
      %118 = vector.shape_cast %117 : vector<1xf32> to vector<1x1x1xf32>
      %119 = vector.extract %118[0, 0, 0] : f32 from vector<1x1x1xf32>
      %120 = arith.addf %113, %119 : f32
      %c1_53 = arith.constant 1 : index
      %121 = memref.load %arg9[%c1_53] : memref<4xf32, #tpu.memory_space<smem>>
      memref.store %120, %arg9[%c1_53] : memref<4xf32, #tpu.memory_space<smem>>
      %122 = arith.mulf %91, %92 : vector<8x24xf32>
      %123 = vector.broadcast %97 : vector<1x24xf32> to vector<8x24xf32>
      %124 = arith.mulf %122, %123 : vector<8x24xf32>
      %cst_54 = arith.constant dense<0.000000e+00> : vector<8xf32>
      %125 = vector.multi_reduction <add>, %124, %cst_54 [1] : vector<8x24xf32> to vector<8xf32>
      %126 = vector.shape_cast %125 : vector<8xf32> to vector<8x1xf32>
      %127 = arith.mulf %91, %91 : vector<8x24xf32>
      %128 = vector.broadcast %97 : vector<1x24xf32> to vector<8x24xf32>
      %129 = arith.mulf %127, %128 : vector<8x24xf32>
      %cst_55 = arith.constant dense<0.000000e+00> : vector<8xf32>
      %130 = vector.multi_reduction <add>, %129, %cst_55 [1] : vector<8x24xf32> to vector<8xf32>
      %131 = vector.shape_cast %130 : vector<8xf32> to vector<8x1xf32>
      %132 = arith.mulf %92, %92 : vector<8x24xf32>
      %133 = vector.broadcast %97 : vector<1x24xf32> to vector<8x24xf32>
      %134 = arith.mulf %132, %133 : vector<8x24xf32>
      %cst_56 = arith.constant dense<0.000000e+00> : vector<8xf32>
      %135 = vector.multi_reduction <add>, %134, %cst_56 [1] : vector<8x24xf32> to vector<8xf32>
      %136 = vector.shape_cast %135 : vector<8xf32> to vector<8x1xf32>
      %cst_57 = arith.constant 1.000000e-16 : f32
      %137 = vector.broadcast %cst_57 : f32 to vector<8x1xf32>
      %138 = arith.maximumf %131, %137 : vector<8x1xf32>
      %139 = math.rsqrt %138 : vector<8x1xf32>
      %140 = arith.mulf %126, %139 : vector<8x1xf32>
      %cst_58 = arith.constant 1.000000e-16 : f32
      %141 = vector.broadcast %cst_58 : f32 to vector<8x1xf32>
      %142 = arith.maximumf %136, %141 : vector<8x1xf32>
      %143 = math.rsqrt %142 : vector<8x1xf32>
      %144 = arith.mulf %140, %143 : vector<8x1xf32>
      %c2 = arith.constant 2 : index
      %145 = memref.load %arg9[%c2] : memref<4xf32, #tpu.memory_space<smem>>
      %146 = arith.mulf %144, %12 : vector<8x1xf32>
      %147 = vector.shape_cast %146 : vector<8x1xf32> to vector<1x8x1xf32>
      %cst_59 = arith.constant dense<0.000000e+00> : vector<1xf32>
      %148 = vector.multi_reduction <add>, %147, %cst_59 [1, 2] : vector<1x8x1xf32> to vector<1xf32>
      %149 = vector.shape_cast %148 : vector<1xf32> to vector<1x1x1xf32>
      %150 = vector.extract %149[0, 0, 0] : f32 from vector<1x1x1xf32>
      %151 = arith.addf %145, %150 : f32
      %c2_60 = arith.constant 2 : index
      %152 = memref.load %arg9[%c2_60] : memref<4xf32, #tpu.memory_space<smem>>
      memref.store %151, %arg9[%c2_60] : memref<4xf32, #tpu.memory_space<smem>>
      %cst_61 = arith.constant -1.000000e+30 : f32
      %153 = vector.broadcast %cst_61 : f32 to vector<8x1xf32>
      %c0_62 = arith.constant 0 : index
      %c0_63 = arith.constant 0 : index
      %154 = vector.load %arg10[%c0_62, %c0_63] : memref<8x1xf32, #tpu.memory_space<vmem>>, vector<8x1xf32>
      tpu.vector_store %arg10[%c0_62, %c0_63], %153 {strides = array<i32>} : memref<8x1xf32, #tpu.memory_space<vmem>>, vector<8x1xf32>,
      %cst_64 = arith.constant 0.000000e+00 : f32
      %155 = vector.broadcast %cst_64 : f32 to vector<8x1xf32>
      %c0_65 = arith.constant 0 : index
      %c0_66 = arith.constant 0 : index
      %156 = vector.load %arg11[%c0_65, %c0_66] : memref<8x1xf32, #tpu.memory_space<vmem>>, vector<8x1xf32>
      tpu.vector_store %arg11[%c0_65, %c0_66], %155 {strides = array<i32>} : memref<8x1xf32, #tpu.memory_space<vmem>>, vector<8x1xf32>,
      %cst_67 = arith.constant 0.000000e+00 : f32
      %157 = vector.broadcast %cst_67 : f32 to vector<8x1xf32>
      %c0_68 = arith.constant 0 : index
      %c0_69 = arith.constant 0 : index
      %158 = vector.load %arg12[%c0_68, %c0_69] : memref<8x1xf32, #tpu.memory_space<vmem>>, vector<8x1xf32>
      tpu.vector_store %arg12[%c0_68, %c0_69], %157 {strides = array<i32>} : memref<8x1xf32, #tpu.memory_space<vmem>>, vector<8x1xf32>,
      %cst_70 = arith.constant 0.000000e+00 : f32
      %159 = vector.broadcast %cst_70 : f32 to vector<8x1xf32>
      %c0_71 = arith.constant 0 : index
      %c0_72 = arith.constant 0 : index
      %160 = vector.load %arg13[%c0_71, %c0_72] : memref<8x1xf32, #tpu.memory_space<vmem>>, vector<8x1xf32>
      tpu.vector_store %arg13[%c0_71, %c0_72], %159 {strides = array<i32>} : memref<8x1xf32, #tpu.memory_space<vmem>>, vector<8x1xf32>,
    } else {
    }
    %c0 = arith.constant 0 : index
    %c0_5 = arith.constant 0 : index
    %16 = vector.load %arg4[%c0, %c0_5] : memref<8x32xf32, #tpu.memory_space<vmem>>, vector<8x32xf32>
    %c0_6 = arith.constant 0 : index
    %c0_7 = arith.constant 0 : index
    %17 = vector.load %arg5[%c0_6, %c0_7] : memref<8x32xf32, #tpu.memory_space<vmem>>, vector<8x32xf32>
    %18 = arith.mulf %16, %16 : vector<8x32xf32>
    %cst = arith.constant dense<0.000000e+00> : vector<8xf32>
    %19 = vector.multi_reduction <add>, %18, %cst [1] : vector<8x32xf32> to vector<8xf32>
    %20 = vector.shape_cast %19 : vector<8xf32> to vector<8x1xf32>
    %cst_8 = arith.constant 1.000000e-24 : f32
    %21 = vector.broadcast %cst_8 : f32 to vector<8x1xf32>
    %22 = arith.maximumf %20, %21 : vector<8x1xf32>
    %23 = math.rsqrt %22 : vector<8x1xf32>
    %24 = vector.broadcast %23 : vector<8x1xf32> to vector<8x32xf32>
    %25 = arith.mulf %16, %24 : vector<8x32xf32>
    %26 = arith.mulf %17, %17 : vector<8x32xf32>
    %cst_9 = arith.constant dense<0.000000e+00> : vector<8xf32>
    %27 = vector.multi_reduction <add>, %26, %cst_9 [1] : vector<8x32xf32> to vector<8xf32>
    %28 = vector.shape_cast %27 : vector<8xf32> to vector<8x1xf32>
    %cst_10 = arith.constant 1.000000e-24 : f32
    %29 = vector.broadcast %cst_10 : f32 to vector<8x1xf32>
    %30 = arith.maximumf %28, %29 : vector<8x1xf32>
    %31 = math.rsqrt %30 : vector<8x1xf32>
    %32 = vector.broadcast %31 : vector<8x1xf32> to vector<8x32xf32>
    %33 = arith.mulf %17, %32 : vector<8x32xf32>
    %cst_11 = arith.constant dense<0.000000e+00> : vector<8x8xf32>
    %34 = tpu.matmul %25, %33, %cst_11 {dimension_numbers = #tpu.dot_dimension_numbers<[1], [1], [0], [0], [0, 0, 1, 0], [], []>} : vector<8x32xf32>, vector<8x32xf32>, vector<8x8xf32> -> vector<8x8xf32>
    %cst_12 = arith.constant 14.2857141 : f32
    %35 = vector.broadcast %cst_12 : f32 to vector<8x8xf32>
    %36 = arith.mulf %34, %35 : vector<8x8xf32>
    %c8_i32_13 = arith.constant 8 : i32
    %37 = arith.muli %arg1, %c8_i32_13 : i32
    %38 = tpu.iota {dimensions = array<i32: 1>} : vector<1x8xi32>
    %39 = vector.broadcast %37 : i32 to vector<1x8xi32>
    %40 = arith.addi %39, %38 : vector<1x8xi32>
    %c8_i32_14 = arith.constant 8 : i32
    %41 = vector.broadcast %c8_i32_14 : i32 to vector<1x8xi32>
    %42 = arith.cmpi slt, %40, %41 : vector<1x8xi32>
    %43 = arith.extui %42 : vector<1x8xi1> to vector<1x8xi32>
    %44 = arith.sitofp %43 : vector<1x8xi32> to vector<1x8xf32>
    %c0_15 = arith.constant 0 : index
    %c0_16 = arith.constant 0 : index
    %45 = vector.load %arg6[%c0_15, %c0_16] : memref<8x1xi32, #tpu.memory_space<vmem>>, vector<8x1xi32>
    %c0_17 = arith.constant 0 : index
    %c0_18 = arith.constant 0 : index
    %46 = vector.load %arg7[%c0_17, %c0_18] : memref<1x8xi32, #tpu.memory_space<vmem>>, vector<1x8xi32>
    %47 = vector.broadcast %45 : vector<8x1xi32> to vector<8x8xi32>
    %48 = vector.broadcast %46 : vector<1x8xi32> to vector<8x8xi32>
    %49 = arith.cmpi eq, %47, %48 : vector<8x8xi32>
    %50 = arith.extui %49 : vector<8x8xi1> to vector<8x8xi32>
    %51 = arith.sitofp %50 : vector<8x8xi32> to vector<8x8xf32>
    %52 = vector.broadcast %44 : vector<1x8xf32> to vector<8x8xf32>
    %53 = arith.mulf %51, %52 : vector<8x8xf32>
    %c0_19 = arith.constant 0 : index
    %c0_20 = arith.constant 0 : index
    %54 = vector.load %arg10[%c0_19, %c0_20] : memref<8x1xf32, #tpu.memory_space<vmem>>, vector<8x1xf32>
    %cst_21 = arith.constant dense<0xFF800000> : vector<8xf32>
    %55 = vector.multi_reduction <maximumf>, %36, %cst_21 [1] : vector<8x8xf32> to vector<8xf32>
    %56 = vector.shape_cast %55 : vector<8xf32> to vector<8x1xf32>
    %57 = arith.maximumf %54, %56 : vector<8x1xf32>
    %58 = vector.broadcast %57 : vector<8x1xf32> to vector<8x8xf32>
    %59 = arith.subf %36, %58 : vector<8x8xf32>
    %60 = math.exp %59 : vector<8x8xf32>
    %61 = vector.broadcast %44 : vector<1x8xf32> to vector<8x8xf32>
    %62 = arith.mulf %60, %61 : vector<8x8xf32>
    %c0_22 = arith.constant 0 : index
    %c0_23 = arith.constant 0 : index
    %63 = vector.load %arg11[%c0_22, %c0_23] : memref<8x1xf32, #tpu.memory_space<vmem>>, vector<8x1xf32>
    %64 = arith.subf %54, %57 : vector<8x1xf32>
    %65 = math.exp %64 : vector<8x1xf32>
    %66 = arith.mulf %63, %65 : vector<8x1xf32>
    %cst_24 = arith.constant dense<0.000000e+00> : vector<8xf32>
    %67 = vector.multi_reduction <add>, %62, %cst_24 [1] : vector<8x8xf32> to vector<8xf32>
    %68 = vector.shape_cast %67 : vector<8xf32> to vector<8x1xf32>
    %69 = arith.addf %66, %68 : vector<8x1xf32>
    %c0_25 = arith.constant 0 : index
    %c0_26 = arith.constant 0 : index
    %70 = vector.load %arg11[%c0_25, %c0_26] : memref<8x1xf32, #tpu.memory_space<vmem>>, vector<8x1xf32>
    tpu.vector_store %arg11[%c0_25, %c0_26], %69 {strides = array<i32>} : memref<8x1xf32, #tpu.memory_space<vmem>>, vector<8x1xf32>,
    %c0_27 = arith.constant 0 : index
    %c0_28 = arith.constant 0 : index
    %71 = vector.load %arg12[%c0_27, %c0_28] : memref<8x1xf32, #tpu.memory_space<vmem>>, vector<8x1xf32>
    %72 = arith.mulf %36, %53 : vector<8x8xf32>
    %cst_29 = arith.constant dense<0.000000e+00> : vector<8xf32>
    %73 = vector.multi_reduction <add>, %72, %cst_29 [1] : vector<8x8xf32> to vector<8xf32>
    %74 = vector.shape_cast %73 : vector<8xf32> to vector<8x1xf32>
    %75 = arith.addf %71, %74 : vector<8x1xf32>
    %c0_30 = arith.constant 0 : index
    %c0_31 = arith.constant 0 : index
    %76 = vector.load %arg12[%c0_30, %c0_31] : memref<8x1xf32, #tpu.memory_space<vmem>>, vector<8x1xf32>
    tpu.vector_store %arg12[%c0_30, %c0_31], %75 {strides = array<i32>} : memref<8x1xf32, #tpu.memory_space<vmem>>, vector<8x1xf32>,
    %c0_32 = arith.constant 0 : index
    %c0_33 = arith.constant 0 : index
    %77 = vector.load %arg13[%c0_32, %c0_33] : memref<8x1xf32, #tpu.memory_space<vmem>>, vector<8x1xf32>
    %cst_34 = arith.constant dense<0.000000e+00> : vector<8xf32>
    %78 = vector.multi_reduction <add>, %53, %cst_34 [1] : vector<8x8xf32> to vector<8xf32>
    %79 = vector.shape_cast %78 : vector<8xf32> to vector<8x1xf32>
    %80 = arith.addf %77, %79 : vector<8x1xf32>
    %c0_35 = arith.constant 0 : index
    %c0_36 = arith.constant 0 : index
    %81 = vector.load %arg13[%c0_35, %c0_36] : memref<8x1xf32, #tpu.memory_space<vmem>>, vector<8x1xf32>
    tpu.vector_store %arg13[%c0_35, %c0_36], %80 {strides = array<i32>} : memref<8x1xf32, #tpu.memory_space<vmem>>, vector<8x1xf32>,
    %c0_37 = arith.constant 0 : index
    %c0_38 = arith.constant 0 : index
    %82 = vector.load %arg10[%c0_37, %c0_38] : memref<8x1xf32, #tpu.memory_space<vmem>>, vector<8x1xf32>
    tpu.vector_store %arg10[%c0_37, %c0_38], %57 {strides = array<i32>} : memref<8x1xf32, #tpu.memory_space<vmem>>, vector<8x1xf32>,
    %c0_i32_39 = arith.constant 0 : i32
    %83 = arith.cmpi eq, %arg1, %c0_i32_39 : i32
    %84 = arith.extui %83 : i1 to i32
    %c0_i32_40 = arith.constant 0 : i32
    %85 = arith.cmpi ne, %84, %c0_i32_40 : i32
    scf.if %85 {
      %c0_44 = arith.constant 0 : index
      %c0_45 = arith.constant 0 : index
      %91 = vector.load %arg13[%c0_44, %c0_45] : memref<8x1xf32, #tpu.memory_space<vmem>>, vector<8x1xf32>
      %c0_46 = arith.constant 0 : index
      %c0_47 = arith.constant 0 : index
      %92 = vector.load %arg10[%c0_46, %c0_47] : memref<8x1xf32, #tpu.memory_space<vmem>>, vector<8x1xf32>
      %c0_48 = arith.constant 0 : index
      %c0_49 = arith.constant 0 : index
      %93 = vector.load %arg11[%c0_48, %c0_49] : memref<8x1xf32, #tpu.memory_space<vmem>>, vector<8x1xf32>
      %94 = math.log %93 : vector<8x1xf32>
      %95 = arith.addf %92, %94 : vector<8x1xf32>
      %c0_50 = arith.constant 0 : index
      %c0_51 = arith.constant 0 : index
      %96 = vector.load %arg12[%c0_50, %c0_51] : memref<8x1xf32, #tpu.memory_space<vmem>>, vector<8x1xf32>
      %97 = arith.mulf %91, %95 : vector<8x1xf32>
      %98 = arith.subf %96, %97 : vector<8x1xf32>
      %cst_52 = arith.constant 9.99999997E-7 : f32
      %99 = vector.broadcast %cst_52 : f32 to vector<8x1xf32>
      %100 = arith.addf %91, %99 : vector<8x1xf32>
      %101 = arith.divf %98, %100 : vector<8x1xf32>
      %c3 = arith.constant 3 : index
      %102 = memref.load %arg9[%c3] : memref<4xf32, #tpu.memory_space<smem>>
      %103 = arith.mulf %101, %12 : vector<8x1xf32>
      %104 = vector.shape_cast %103 : vector<8x1xf32> to vector<1x8x1xf32>
      %cst_53 = arith.constant dense<0.000000e+00> : vector<1xf32>
      %105 = vector.multi_reduction <add>, %104, %cst_53 [1, 2] : vector<1x8x1xf32> to vector<1xf32>
      %106 = vector.shape_cast %105 : vector<1xf32> to vector<1x1x1xf32>
      %107 = vector.extract %106[0, 0, 0] : f32 from vector<1x1x1xf32>
      %108 = arith.addf %102, %107 : f32
      %c3_54 = arith.constant 3 : index
      %109 = memref.load %arg9[%c3_54] : memref<4xf32, #tpu.memory_space<smem>>
      memref.store %108, %arg9[%c3_54] : memref<4xf32, #tpu.memory_space<smem>>
    } else {
    }
    %c0_i32_41 = arith.constant 0 : i32
    %86 = arith.cmpi eq, %arg0, %c0_i32_41 : i32
    %c0_i32_42 = arith.constant 0 : i32
    %87 = arith.cmpi eq, %arg1, %c0_i32_42 : i32
    %88 = arith.andi %86, %87 : i1
    %89 = arith.extui %88 : i1 to i32
    %c0_i32_43 = arith.constant 0 : i32
    %90 = arith.cmpi ne, %89, %c0_i32_43 : i32
    scf.if %90 {
      %c0_44 = arith.constant 0 : index
      %91 = memref.load %arg9[%c0_44] : memref<4xf32, #tpu.memory_space<smem>>
      %cst_45 = arith.constant 0.0069444445 : f32
      %92 = arith.mulf %91, %cst_45 : f32
      %c1 = arith.constant 1 : index
      %93 = memref.load %arg9[%c1] : memref<4xf32, #tpu.memory_space<smem>>
      %cst_46 = arith.constant 0.020833334 : f32
      %94 = arith.mulf %93, %cst_46 : f32
      %c2 = arith.constant 2 : index
      %95 = memref.load %arg9[%c2] : memref<4xf32, #tpu.memory_space<smem>>
      %cst_47 = arith.constant 1.250000e-01 : f32
      %96 = arith.mulf %95, %cst_47 : f32
      %cst_48 = arith.constant 1.000000e+00 : f32
      %97 = arith.subf %cst_48, %96 : f32
      %cst_49 = arith.constant 1.000000e-01 : f32
      %98 = arith.mulf %cst_49, %97 : f32
      %99 = arith.addf %94, %98 : f32
      %c3 = arith.constant 3 : index
      %100 = memref.load %arg9[%c3] : memref<4xf32, #tpu.memory_space<smem>>
      %cst_50 = arith.constant 0.000000e+00 : f32
      %101 = arith.subf %cst_50, %100 : f32
      %cst_51 = arith.constant 1.250000e-01 : f32
      %102 = arith.mulf %101, %cst_51 : f32
      %cst_52 = arith.constant 5.000000e-01 : f32
      %103 = arith.mulf %cst_52, %99 : f32
      %104 = arith.addf %92, %103 : f32
      %cst_53 = arith.constant 3.000000e-01 : f32
      %105 = arith.mulf %cst_53, %102 : f32
      %106 = arith.addf %104, %105 : f32
      %c0_54 = arith.constant 0 : index
      %107 = memref.load %arg8[%c0_54] : memref<4xf32, #tpu.memory_space<smem>>
      memref.store %106, %arg8[%c0_54] : memref<4xf32, #tpu.memory_space<smem>>
      %c1_55 = arith.constant 1 : index
      %108 = memref.load %arg8[%c1_55] : memref<4xf32, #tpu.memory_space<smem>>
      memref.store %92, %arg8[%c1_55] : memref<4xf32, #tpu.memory_space<smem>>
      %c2_56 = arith.constant 2 : index
      %109 = memref.load %arg8[%c2_56] : memref<4xf32, #tpu.memory_space<smem>>
      memref.store %99, %arg8[%c2_56] : memref<4xf32, #tpu.memory_space<smem>>
      %c3_57 = arith.constant 3 : index
      %110 = memref.load %arg8[%c3_57] : memref<4xf32, #tpu.memory_space<smem>>
      memref.store %102, %arg8[%c3_57] : memref<4xf32, #tpu.memory_space<smem>>
    } else {
    }
    return
  }
  func.func @transform_0(%arg0: i32, %arg1: i32) -> (i32, i32) {
    %c0_i32 = arith.constant 0 : i32
    %c0_i32_0 = arith.constant 0 : i32
    return %arg0, %c0_i32 : i32, i32
  }
  func.func @transform_1(%arg0: i32, %arg1: i32) -> (i32, i32) {
    %c0_i32 = arith.constant 0 : i32
    %c0_i32_0 = arith.constant 0 : i32
    return %arg0, %c0_i32 : i32, i32
  }
  func.func @transform_2(%arg0: i32, %arg1: i32) -> (i32, i32) {
    %c0_i32 = arith.constant 0 : i32
    %c0_i32_0 = arith.constant 0 : i32
    return %arg0, %c0_i32 : i32, i32
  }
  func.func @transform_3(%arg0: i32, %arg1: i32) -> (i32, i32) {
    %c0_i32 = arith.constant 0 : i32
    %c0_i32_0 = arith.constant 0 : i32
    return %arg1, %c0_i32 : i32, i32
  }
  func.func @transform_4(%arg0: i32, %arg1: i32) -> (i32, i32) {
    %c0_i32 = arith.constant 0 : i32
    %c0_i32_0 = arith.constant 0 : i32
    return %arg0, %c0_i32 : i32, i32
  }
  func.func @transform_5(%arg0: i32, %arg1: i32) -> (i32, i32) {
    %c0_i32 = arith.constant 0 : i32
    %c0_i32_0 = arith.constant 0 : i32
    return %c0_i32, %arg1 : i32, i32
  }
  func.func @transform_6(%arg0: i32, %arg1: i32) -> i32 {
    %c0_i32 = arith.constant 0 : i32
    %c0_i32_0 = arith.constant 0 : i32
    return %c0_i32 : i32
  }
}

</mosaic_0001>

<llo_original>
// kernel: tpu_custom_call.1
$region0: #{tpu_custom_call.1}
  #allocation0 [shape = 'u32[]', space=smem, size = 0x4, offset = 0x4, fixed_abs, tag = 'smem constant byte address 0x4 - core index']
  #allocation1 [shape = 'u32[144,128]{1,0:T(1,128)}', space=vmem, size = 0x12000, scoped, tag = 'internal scratch']
  #allocation2 [shape = 'f32[4]{0:T(128)}', space=smem, size = 0x200, scoped, tag = 'scratch operand']
  #allocation3 [shape = 'f32[8,1]{1,0:T(8,128)}', space=vmem, size = 0x1000, scoped, tag = 'scratch operand']
  #allocation4 [shape = 'f32[8,1]{1,0:T(8,128)}', space=vmem, size = 0x1000, scoped, tag = 'scratch operand']
  #allocation5 [shape = 'f32[8,1]{1,0:T(8,128)}', space=vmem, size = 0x1000, scoped, tag = 'scratch operand']
  #allocation6 [shape = 'f32[8,1]{1,0:T(8,128)}', space=vmem, size = 0x1000, scoped, tag = 'scratch operand']
  %s0 = inlined_call_operand.vmem [shape: f32[8,24], index: 0, kind: input, shape index: {}]
  %s1 = inlined_call_operand.hbm [shape: f32[8,24], index: 1, kind: input, shape index: {}]
  %s2 = inlined_call_operand.vmem [shape: f32[8,32], index: 2, kind: input, shape index: {}]
  %s3 = inlined_call_operand.hbm [shape: f32[8,32], index: 3, kind: input, shape index: {}]
  %s4 = inlined_call_operand.vmem [shape: s32[8,1], index: 4, kind: input, shape index: {}]
  %s5 = inlined_call_operand.vmem [shape: s32[1,8], index: 5, kind: input, shape index: {}]
  %s6 = inlined_call_operand.hbm [shape: f32[4], index: 6, kind: output, shape index: {}]
  %s7 = sld [smem:[#allocation0]]
  $region58: #{tpu_custom_call.1} parent=0
    _
  %s9 = ssub.s32 1, %s7
  %s10 = scalar_select 0, %s9, %s7
  $region1: #{tpu_custom_call.1} parent=0
    #allocation7 [shape = 'u8[4096]{0}', space=vmem, size = 0x1000, scoped, tag = 'input window, operand 1, single buffered']
    #allocation8 [shape = 's32[1]{0}', space=sflag, size = 0x4, scoped, tag = 'scoped memory for tpu_custom_call.1']
    #allocation9 [shape = 's32[1]{0}', space=sflag, size = 0x4, scoped, tag = 'scoped memory for tpu_custom_call.1']
    #allocation10 [shape = 'u8[4096]{0}', space=vmem, size = 0x1000, scoped, tag = 'input window, operand 3, single buffered']
    #allocation11 [shape = 's32[1]{0}', space=sflag, size = 0x4, scoped, tag = 'scoped memory for tpu_custom_call.1']
    #allocation12 [shape = 'u8[512]{0}', space=smem, size = 0x200, scoped, tag = 'output window, operand 0, single buffered']
    %11 = vsyncpa [#allocation8], 0
    %12 = vsyncpa [#allocation11], 0
    %13 = vsyncpa [#allocation9], 0
    // Predicated region
    $region2: #{tpu_custom_call.1} parent=1 // pred_check
      _
    $region3: #{tpu_custom_call.1} parent=1 // pred_check_branch
      %15 = sbr.rel (0) target = $region5
    $region4: #{tpu_custom_call.1} parent=1 // pred_region
      _
    $region5: #{tpu_custom_call.1} parent=1 // pred_fallthru
      _
    // Predicated region
    $region6: #{tpu_custom_call.1} parent=1 // pred_check
      _
    $region7: #{tpu_custom_call.1} parent=1 // pred_check_branch
      %17 = sbr.rel (0) target = $region9
    $region8: #{tpu_custom_call.1} parent=1 // pred_region
      %s19 = ssub.s32 128, 128
      %20 = vsyncadd [#allocation8], %s19
      %s22 = sshll.u32 [#allocation7], 4
      %s23 = int_to_ptr.vmem [resolvable:$true] %s22
      %25 = dma.hbm_to_vmem [thread:$0]  %s1, 128, %s23, [#allocation8]
    $region9: #{tpu_custom_call.1} parent=1 // pred_fallthru
      _
    // Predicated region
    $region10: #{tpu_custom_call.1} parent=1 // pred_check
      _
    $region11: #{tpu_custom_call.1} parent=1 // pred_check_branch
      %27 = sbr.rel (0) target = $region13
    $region12: #{tpu_custom_call.1} parent=1 // pred_region
      _
    $region13: #{tpu_custom_call.1} parent=1 // pred_fallthru
      _
    // Predicated region
    $region14: #{tpu_custom_call.1} parent=1 // pred_check
      _
    $region15: #{tpu_custom_call.1} parent=1 // pred_check_branch
      %29 = sbr.rel (0) target = $region17
    $region16: #{tpu_custom_call.1} parent=1 // pred_region
      %s31 = ssub.s32 128, 128
      %32 = vsyncadd [#allocation11], %s31
      %s34 = sshll.u32 [#allocation10], 4
      %s35 = int_to_ptr.vmem [resolvable:$true] %s34
      %37 = dma.hbm_to_vmem [thread:$0]  %s3, 128, %s35, [#allocation11]
    $region17: #{tpu_custom_call.1} parent=1 // pred_fallthru
      _
    // Predicated region
    $region18: #{tpu_custom_call.1} parent=1 // pred_check
      _
    $region19: #{tpu_custom_call.1} parent=1 // pred_check_branch
      %39 = sbr.rel (0) target = $region21
    $region20: #{tpu_custom_call.1} parent=1 // pred_region
      _
    $region21: #{tpu_custom_call.1} parent=1 // pred_fallthru
      _
    // Predicated region
    $region22: #{tpu_custom_call.1} parent=1 // pred_check
      _
    $region23: #{tpu_custom_call.1} parent=1 // pred_check_branch
      %41 = sbr.rel (0) target = $region25
    $region24: #{tpu_custom_call.1} parent=1 // pred_region
      _
    $region25: #{tpu_custom_call.1} parent=1 // pred_fallthru
      _
    // Predicated region
    $region26: #{tpu_custom_call.1} parent=1 // pred_check
      _
    $region27: #{tpu_custom_call.1} parent=1 // pred_check_branch
      %43 = sbr.rel (0) target = $region29
    $region28: #{tpu_custom_call.1} parent=1 // pred_region
      %44 = dma.done [#allocation8], 128
    $region29: #{tpu_custom_call.1} parent=1 // pred_fallthru
      _
    // Predicated region
    $region30: #{tpu_custom_call.1} parent=1 // pred_check
      _
    $region31: #{tpu_custom_call.1} parent=1 // pred_check_branch
      %46 = sbr.rel (0) target = $region33
    $region32: #{tpu_custom_call.1} parent=1 // pred_region
      %47 = dma.done [#allocation11], 128
    $region33: #{tpu_custom_call.1} parent=1 // pred_fallthru
      _
    %p48 = scmp.eq.s32.totalorder 0, 0
    %p49 = scmp.eq.s32.totalorder 0, 0
    %p50 = pnand %p48, %p49
    %p51 = pneg %p50
    // Predicated region
    $region34: #{tpu_custom_call.1} parent=1 // pred_check
      _
    $region35: #{tpu_custom_call.1} parent=1 // pred_check_branch
      %53 = sbr.rel (%p50) target = $region37
    $region36: #{tpu_custom_call.1} parent=1 // pred_region
      %s54 = scalar_lea.smem [#allocation2], 0
      %55 = sst [smem:[%s54]] 0.0
      %s56 = scalar_lea.smem [#allocation2], 1
      %57 = sst [smem:[%s56]] 0.0
      %s58 = scalar_lea.smem [#allocation2], 2
      %59 = sst [smem:[%s58]] 0.0
      %s60 = scalar_lea.smem [#allocation2], 3
      %61 = sst [smem:[%s60]] 0.0
    $region37: #{tpu_custom_call.1} parent=1 // pred_fallthru
      _
    %s62 = smul.u32 0, 8
    %v63 = vlaneseq
    %v64 = vshrl.u32 %v63, 7
    %v65 = vstv %s62
    %v66 = vadd.s32 %v65, %v64
    %vm67 = vcmp.lt.s32.totalorder %v66, 8
    %v68 = vsel %vm67, 1, 0
    %v69 = vcvt.s32.f32 %v68
    // Predicated region
    $region38: #{tpu_custom_call.1} parent=1 // pred_check
      %p70 = pneg %p49
    $region39: #{tpu_custom_call.1} parent=1 // pred_check_branch
      %72 = sbr.rel (%p70) target = $region41
    $region40: #{tpu_custom_call.1} parent=1 // pred_region
      %v73 = vld [vmem:[%s0] sm:$0xff]
      %v74 = vld [vmem:[#allocation7] sm:$0xff]
      %v75 = vlaneseq
      %v76 = vand.u32 %v75, 127
      %vm77 = vcmp.lt.s32.totalorder %v76, 6
      %v78 = vsel %vm77, 1, 0
      %v79 = vcvt.s32.f32 %v78
      %v80 = vsub.f32 1.0, %v79
      %v81 = vsub.f32 %v73, %v74
      %v82 = vmul.f32 %v81, %v81
      %v83 = vmul.f32 %v82, %v69
      %s84 = sld [smem:[#allocation2]]
      %v85 = vmul.f32 %v83, %v80
      %vm86 = vcmask 195584
      %v87 = vsel %vm86, %v85, 0.0
      %88 = vadd.xlane.f32.xlu0 %v87
      %v89 = vpop.xlane.xlu0 %88
      %v90 = vrot.slane %v89, 4
      %v91 = vadd.f32 %v89, %v90
      %v92 = vrot.slane %v91, 2
      %v93 = vadd.f32 %v91, %v92
      %v94 = vrot.slane %v93, 1
      %v95 = vadd.f32 %v93, %v94
      %s96 = vtos %v95
      %s97 = sadd.f32 %s84, %s96
      %s98 = scalar_lea.smem [#allocation2], 0
      %99 = sst [smem:[%s98]] %s97
      %s100 = sld [smem:[#allocation2 + $0x1]]
      %v101 = vmul.f32 %v83, %v79
      %v102 = vsel %vm86, %v101, 0.0
      %103 = vadd.xlane.f32.xlu0 %v102
      %v104 = vpop.xlane.xlu0 %103
      %v105 = vrot.slane %v104, 4
      %v106 = vadd.f32 %v104, %v105
      %v107 = vrot.slane %v106, 2
      %v108 = vadd.f32 %v106, %v107
      %v109 = vrot.slane %v108, 1
      %v110 = vadd.f32 %v108, %v109
      %s111 = vtos %v110
      %s112 = sadd.f32 %s100, %s111
      %s113 = scalar_lea.smem [#allocation2], 1
      %114 = sst [smem:[%s113]] %s112
      %v115 = vmul.f32 %v73, %v74
      %v116 = vmul.f32 %v115, %v79
      %v117 = vsel %vm86, %v116, 0.0
      %118 = vadd.xlane.f32.xlu0 %v117
      %v119 = vpop.xlane.xlu0 %118
      %v120 = vmul.f32 %v73, %v73
      %v121 = vmul.f32 %v120, %v79
      %v122 = vsel %vm86, %v121, 0.0
      %123 = vadd.xlane.f32.xlu0 %v122
      %v124 = vpop.xlane.xlu0 %123
      %v125 = vmul.f32 %v74, %v74
      %v126 = vmul.f32 %v125, %v79
      %v127 = vsel %vm86, %v126, 0.0
      %128 = vadd.xlane.f32.xlu0 %v127
      %v129 = vpop.xlane.xlu0 %128
      %v130 = vmax.f32 %v124, 1e-16
      %v131 = vrsqrt.pop %v130
      %v132 = vmul.f32 %v119, %v131
      %v133 = vmax.f32 %v129, 1e-16
      %v134 = vrsqrt.pop %v133
      %v135 = vmul.f32 %v132, %v134
      %s136 = sld [smem:[#allocation2 + $0x2]]
      %v137 = vmul.f32 %v135, %v69
      %vm138 = vcmask 7168
      %v139 = vsel %vm138, %v137, 0.0
      %140 = vadd.xlane.f32.xlu0 %v139
      %v141 = vpop.xlane.xlu0 %140
      %v142 = vrot.slane %v141, 4
      %v143 = vadd.f32 %v141, %v142
      %v144 = vrot.slane %v143, 2
      %v145 = vadd.f32 %v143, %v144
      %v146 = vrot.slane %v145, 1
      %v147 = vadd.f32 %v145, %v146
      %s148 = vtos %v147
      %s149 = sadd.f32 %s136, %s148
      %s150 = scalar_lea.smem [#allocation2], 2
      %151 = sst [smem:[%s150]] %s149
      %152 = vst.msk [vmem:[#allocation3] sm:$0xff] %vm138, -1e+30
      %153 = vst.msk [vmem:[#allocation4] sm:$0xff] %vm138, 0.0
      %154 = vst.msk [vmem:[#allocation5] sm:$0xff] %vm138, 0.0
      %155 = vst.msk [vmem:[#allocation6] sm:$0xff] %vm138, 0.0
    $region41: #{tpu_custom_call.1} parent=1 // pred_fallthru
      _
    %v156 = vld [vmem:[%s2] sm:$0xff]
    %v157 = vld [vmem:[#allocation10] sm:$0xff]
    %v158 = vmul.f32 %v156, %v156
    %vm159 = vcmask 261120
    %v160 = vsel %vm159, %v158, 0.0
    %161 = vadd.xlane.f32.xlu0 %v160
    %v162 = vpop.xlane.xlu0 %161
    %v163 = vmax.f32 %v162, 1e-24
    %v164 = vrsqrt.pop %v163
    %v165 = vmul.f32 %v156, %v164
    %v166 = vmul.f32 %v157, %v157
    %v167 = vsel %vm159, %v166, 0.0
    %168 = vadd.xlane.f32.xlu0 %v167
    %v169 = vpop.xlane.xlu0 %168
    %v170 = vmax.f32 %v169, 1e-24
    %v171 = vrsqrt.pop %v170
    %v172 = vmul.f32 %v157, %v171
    %v174 = vsel %vm159, %v165, 0
    %v177 = vsel %vm159, %v172, 0
    %179 = vmatprep.subr.mxu0 0.0
    %180 = vmatpush1.xpose.msra.mxu0 %v177
    %181 = vmatprep.subr.mxu0 0.0
    %182 = vmatpush1.xpose.msra.mxu0 0.0
    %183 = vmatprep.subr.mxu0 0.0
    %184 = vmatpush1.xpose.msra.mxu0 0.0
    %185 = vmatprep.subr.mxu0 0.0
    %186 = vmatpush1.xpose.msra.mxu0 0.0
    %187 = vmatprep.subr.mxu0 0.0
    %188 = vmatpush1.xpose.msra.mxu0 0.0
    %189 = vmatprep.subr.mxu0 0.0
    %190 = vmatpush1.xpose.msra.mxu0 0.0
    %191 = vmatprep.subr.mxu0 0.0
    %192 = vmatpush1.xpose.msra.mxu0 0.0
    %193 = vmatprep.subr.mxu0 0.0
    %194 = vmatpush1.xpose.msra.mxu0 0.0
    %195 = vmatprep.subr.mxu0 0.0
    %196 = vmatpush1.xpose.msra.mxu0 0.0
    %197 = vmatprep.subr.mxu0 0.0
    %198 = vmatpush1.xpose.msra.mxu0 0.0
    %199 = vmatprep.subr.mxu0 0.0
    %200 = vmatpush1.xpose.msra.mxu0 0.0
    %201 = vmatprep.subr.mxu0 0.0
    %202 = vmatpush1.xpose.msra.mxu0 0.0
    %203 = vmatprep.subr.mxu0 0.0
    %204 = vmatpush1.xpose.msra.mxu0 0.0
    %205 = vmatprep.subr.mxu0 0.0
    %206 = vmatpush1.xpose.msra.mxu0 0.0
    %207 = vmatprep.subr.mxu0 0.0
    %208 = vmatpush1.xpose.msra.mxu0 0.0
    %209 = vmatprep.subr.mxu0 0.0
    %210 = vmatpush1.xpose.msra.mxu0 0.0
    %211 = vmatprep.subr.mxu0 0.0
    %212 = vmatpush1.xpose.msra.mxu0 0.0
    %213 = vmatprep.subr.mxu0 0.0
    %214 = vmatpush1.xpose.msra.mxu0 0.0
    %215 = vmatprep.subr.mxu0 0.0
    %216 = vmatpush1.xpose.msra.mxu0 0.0
    %217 = vmatprep.subr.mxu0 0.0
    %218 = vmatpush1.xpose.msra.mxu0 0.0
    %219 = vmatprep.subr.mxu0 0.0
    %220 = vmatpush1.xpose.msra.mxu0 0.0
    %221 = vmatprep.subr.mxu0 0.0
    %222 = vmatpush1.xpose.msra.mxu0 0.0
    %223 = vmatprep.subr.mxu0 0.0
    %224 = vmatpush1.xpose.msra.mxu0 0.0
    %225 = vmatprep.subr.mxu0 0.0
    %226 = vmatpush1.xpose.msra.mxu0 0.0
    %227 = vmatprep.subr.mxu0 0.0
    %228 = vmatpush1.xpose.msra.mxu0 0.0
    %229 = vmatprep.subr.mxu0 0.0
    %230 = vmatpush1.xpose.msra.mxu0 0.0
    %231 = vmatprep.subr.mxu0 0.0
    %232 = vmatpush1.xpose.msra.mxu0 0.0
    %233 = vmatprep.subr.mxu0 0.0
    %234 = vmatpush1.xpose.msra.mxu0 0.0
    %235 = vmatprep.subr.mxu0 0.0
    %236 = vmatpush1.xpose.msra.mxu0 0.0
    %237 = vmatprep.subr.mxu0 0.0
    %238 = vmatpush1.xpose.msra.mxu0 0.0
    %239 = vmatprep.subr.mxu0 0.0
    %240 = vmatpush1.xpose.msra.mxu0 0.0
    %241 = vmatprep.subr.mxu0 0.0
    %242 = vmatpush1.xpose.msra.mxu0 0.0
    %243 = vmatprep.mubr.f32.mxu0 0.0
    %244 = vmatmul.mubr.f32.gmra.mrb[0].mxu0 %v174
    %v245 = vpop.f32.mrb[0].mxu0
    %v246 = vadd.f32 0.0, %v245
    %v247 = vpop.f32.mrb[0].mxu0
    %248 = vdwg.mxu0
    %v249 = vmul.f32 %v246, 14.285714
    %s250 = smul.u32 0, 8
    %v251 = vlaneseq
    %v252 = vand.u32 %v251, 127
    %v253 = vstv %s250
    %v254 = vadd.s32 %v253, %v252
    %vm255 = vcmp.lt.s32.totalorder %v254, 8
    %v256 = vsel %vm255, 1, 0
    %v257 = vcvt.s32.f32 %v256
    %v258 = vld [vmem:[%s4] sm:$0xff]
    %v259 = vld [vmem:[%s5] sm:$0x1]
    %260 = vset.pattern.permute.xlu0 0
    %261 = vperm.xlu0 %260, %v258
    %v262 = vpop.permute.xlu0 %261
    %v263 = vlaneseq
    %v264 = vshrl.u32 %v263, 7
    %v265 = vsub.s32 0, %v264
    %v266 = vrot.slane %v259, %v265
    %vm267 = vcmp.eq.s32.totalorder %v262, %v266
    %v268 = vsel %vm267, 1, 0
    %v269 = vcvt.s32.f32 %v268
    %v270 = vmul.f32 %v269, %v257
    %v271 = vld [vmem:[#allocation3] sm:$0xff]
    %vm272 = vcmask 64512
    %v273 = vsel %vm272, %v249, -inf
    %274 = vmax.xlane.f32.xlu0 %v273
    %v275 = vpop.xlane.xlu0 %274
    %v276 = vmax.f32 %v271, %v275
    %278 = vset.pattern.permute.xlu0 0
    %279 = vperm.xlu0 %278, %v276
    %v280 = vpop.permute.xlu0 %279
    %v282 = vsub.f32 %v249, %v280
    %v283 = vmul.f32 %v282, 1.442695
    %v284 = vpow.pop %v283
    %v285 = vmul.f32 %v284, %v257
    %v286 = vld [vmem:[#allocation4] sm:$0xff]
    %v287 = vsub.f32 %v271, %v276
    %v288 = vmul.f32 %v287, 1.442695
    %v289 = vpow.pop %v288
    %v290 = vmul.f32 %v286, %v289
    %v291 = vsel %vm272, %v285, 0.0
    %292 = vadd.xlane.f32.xlu0 %v291
    %v293 = vpop.xlane.xlu0 %292
    %v294 = vadd.f32 %v290, %v293
    %vm295 = vcmask 7168
    %296 = vst.msk [vmem:[#allocation4] sm:$0xff] %vm295, %v294
    %v297 = vld [vmem:[#allocation5] sm:$0xff]
    %v298 = vmul.f32 %v249, %v270
    %v299 = vsel %vm272, %v298, 0.0
    %300 = vadd.xlane.f32.xlu0 %v299
    %v301 = vpop.xlane.xlu0 %300
    %v302 = vadd.f32 %v297, %v301
    %303 = vst.msk [vmem:[#allocation5] sm:$0xff] %vm295, %v302
    %v304 = vld [vmem:[#allocation6] sm:$0xff]
    %v305 = vsel %vm272, %v270, 0.0
    %306 = vadd.xlane.f32.xlu0 %v305
    %v307 = vpop.xlane.xlu0 %306
    %v308 = vadd.f32 %v304, %v307
    %309 = vst.msk [vmem:[#allocation6] sm:$0xff] %vm295, %v308
    %310 = vst.msk [vmem:[#allocation3] sm:$0xff] %vm295, %v276
    // Predicated region
    $region42: #{tpu_custom_call.1} parent=1 // pred_check
      %p311 = pneg %p49
    $region43: #{tpu_custom_call.1} parent=1 // pred_check_branch
      %313 = sbr.rel (%p311) target = $region45
    $region44: #{tpu_custom_call.1} parent=1 // pred_region
      %v314 = vld [vmem:[#allocation6] sm:$0xff]
      %v315 = vld [vmem:[#allocation3] sm:$0xff]
      %v316 = vld [vmem:[#allocation4] sm:$0xff]
      %v317 = vlog2.pop %v316
      %v318 = vmul.f32 %v317, 0.6931472
      %v319 = vadd.f32 %v315, %v318
      %v320 = vld [vmem:[#allocation5] sm:$0xff]
      %v321 = vmul.f32 %v314, %v319
      %v322 = vsub.f32 %v320, %v321
      %v323 = vadd.f32 %v314, 1e-06
      %v324 = vrcp.pop %v323
      %v325 = vmul.f32 %v322, %v324
      %s326 = sld [smem:[#allocation2 + $0x3]]
      %v327 = vmul.f32 %v325, %v69
      %v328 = vsel %vm295, %v327, 0.0
      %329 = vadd.xlane.f32.xlu0 %v328
      %v330 = vpop.xlane.xlu0 %329
      %v331 = vrot.slane %v330, 4
      %v332 = vadd.f32 %v330, %v331
      %v333 = vrot.slane %v332, 2
      %v334 = vadd.f32 %v332, %v333
      %v335 = vrot.slane %v334, 1
      %v336 = vadd.f32 %v334, %v335
      %s337 = vtos %v336
      %s338 = sadd.f32 %s326, %s337
      %s339 = scalar_lea.smem [#allocation2], 3
      %340 = sst [smem:[%s339]] %s338
    $region45: #{tpu_custom_call.1} parent=1 // pred_fallthru
      _
    // Predicated region
    $region46: #{tpu_custom_call.1} parent=1 // pred_check
      _
    $region47: #{tpu_custom_call.1} parent=1 // pred_check_branch
      %342 = sbr.rel (%p50) target = $region49
    $region48: #{tpu_custom_call.1} parent=1 // pred_region
      %s343 = sld [smem:[#allocation2]]
      %s344 = smul.f32 %s343, 0.0069444445
      %s345 = sld [smem:[#allocation2 + $0x1]]
      %s346 = smul.f32 %s345, 0.020833334
      %s347 = sld [smem:[#allocation2 + $0x2]]
      %s348 = smul.f32 %s347, 0.125
      %s349 = ssub.f32 1.0, %s348
      %s350 = smul.f32 %s349, 0.1
      %s351 = sadd.f32 %s346, %s350
      %s352 = sld [smem:[#allocation2 + $0x3]]
      %s353 = ssub.f32 0.0, %s352
      %s354 = smul.f32 %s353, 0.125
      %s355 = smul.f32 %s351, 0.5
      %s356 = sadd.f32 %s344, %s355
      %s357 = smul.f32 %s354, 0.3
      %s358 = sadd.f32 %s356, %s357
      %s359 = scalar_lea.smem [#allocation12], 0
      %360 = sst [smem:[%s359]] %s358
      %s361 = scalar_lea.smem [#allocation12], 1
      %362 = sst [smem:[%s361]] %s344
      %s363 = scalar_lea.smem [#allocation12], 2
      %364 = sst [smem:[%s363]] %s351
      %s365 = scalar_lea.smem [#allocation12], 3
      %366 = sst [smem:[%s365]] %s354
    $region49: #{tpu_custom_call.1} parent=1 // pred_fallthru
      _
    // Predicated region
    $region50: #{tpu_custom_call.1} parent=1 // pred_check
      _
    $region51: #{tpu_custom_call.1} parent=1 // pred_check_branch
      %368 = sbr.rel (0) target = $region53
    $region52: #{tpu_custom_call.1} parent=1 // pred_region
      %s370 = ssub.s32 16, 16
      %371 = vsyncadd [#allocation9], %s370
      %374 = dma.smem_to_hbm [#allocation12], 16, %s6, [#allocation9]
    $region53: #{tpu_custom_call.1} parent=1 // pred_fallthru
      _
    // Predicated region
    $region54: #{tpu_custom_call.1} parent=1 // pred_check
      _
    $region55: #{tpu_custom_call.1} parent=1 // pred_check_branch
      %376 = sbr.rel (0) target = $region57
    $region56: #{tpu_custom_call.1} parent=1 // pred_region
      %377 = dma.done [#allocation9], 16
    $region57: #{tpu_custom_call.1} parent=1 // pred_fallthru
      _
    %378 = sfence
    %379 = vsyncpa [#allocation8], 1
    %380 = vsyncpa [#allocation11], 1
    %381 = vsyncpa [#allocation9], 1

</llo_original>
